<compile_context>
chip_gen: v5e
topology: v5e:2x2
jax: 0.10.0
libtpu: 0.0.40
codegen_flags: <defaults>
</compile_context>

<pallas_src>
import functools

import numpy as np

import jax
import jax.numpy as jnp
from jax.experimental import pallas as pl
from jax.experimental.pallas import tpu as pltpu


# ----------------------------------------------------------------------------
# Helpers
# ----------------------------------------------------------------------------

def _row_tile(r):
    """Pick the largest pixel-tile (lane dim) that evenly divides r."""
    for t in (512, 256, 128):
        if r % t == 0:
            return t
    return r


def make_conv_masks(batch, h, w):
    """(9, 1, B*H*W) bf16 validity masks for the 9 taps of a 3x3 'same' conv on
    a flattened lane axis ordered p = b*H*W + y*W + x (zero padding)."""
    p = np.arange(batch * h * w)
    px = p % w
    py = (p // w) % h
    taps = []
    for ky in range(3):
        for kx in range(3):
            dy, dx = ky - 1, kx - 1
            valid = ((px + dx >= 0) & (px + dx < w) &
                     (py + dy >= 0) & (py + dy < h))
            taps.append(valid.astype(np.float32))
    return jnp.asarray(np.stack(taps, axis=0)[:, None, :], dtype=jnp.bfloat16)


def im2col_t(x, k, stride, pad):
    """NCHW -> transposed patch matrix (C*k*k, B*Ho*Wo).
    Row order (c, ky, kx) matches PyTorch conv-weight flattening;
    pixel (column) order is b*Ho*Wo + y*Wo + x."""
    b, c, h, w = x.shape
    xp = jnp.pad(x, ((0, 0), (0, 0), (pad, pad), (pad, pad)))
    ho = (h + 2 * pad - k) // stride + 1
    wo = (w + 2 * pad - k) // stride + 1
    cols = []
    for ky in range(k):
        for kx in range(k):
            cols.append(xp[:, :, ky:ky + stride * ho:stride,
                           kx:kx + stride * wo:stride])
    pat = jnp.stack(cols, axis=2)              # (B, C, k*k, Ho, Wo)
    pat = pat.transpose(1, 2, 0, 3, 4)         # (C, k*k, B, Ho, Wo)
    return pat.reshape(c * k * k, b * ho * wo), ho, wo


# ----------------------------------------------------------------------------
# Pallas kernels
# ----------------------------------------------------------------------------

def _stem_kernel(p_ref, w_ref, b_ref, o_ref):
    """o = relu(W @ patches + b) for one pixel tile.  W: (Cf, K), patches: (K, TR)."""
    y = jnp.dot(w_ref[...], p_ref[...], preferred_element_type=jnp.float32)
    o_ref[...] = jnp.maximum(y + b_ref[...], 0.0).astype(o_ref.dtype)


def _convlstm_seq_kernel(feat_ref, w_ref, b_ref, m_ref, h_ref, c_ref, *,
                         hidden, width):
    """One timestep of the ConvLSTM recurrence (grid axis 0 = time).

    feat : (1, Cf, R) bf16   per-step CNN features (pixels in lanes)
    w    : (9, 4*Ch, Cf+Ch)  bf16 per-tap gate weights (gate order i, f, o, g)
    b    : (4*Ch, 1)  f32
    m    : (9, 1, R)  bf16   per-tap zero-padding masks
    h    : (Ch, R)    bf16   resident hidden state (output, constant block index)
    c    : (Ch, R)    f32    resident cell state   (output, constant block index)
    """
    t = pl.program_id(0)

    @pl.when(t == 0)
    def _():
        h_ref[...] = jnp.zeros_like(h_ref)
        c_ref[...] = jnp.zeros_like(c_ref)

    x = feat_ref[0]                                   # (Cf, R) bf16
    h_prev = h_ref[...]                               # (Ch, R) bf16
    xh = jnp.concatenate([x, h_prev], axis=0)         # (Cf+Ch, R) bf16
    r = xh.shape[1]

    # 3x3 "same" conv as 9 lane-shifted matmuls accumulated in f32.
    acc = jnp.zeros((4 * hidden, r), jnp.float32)
    for ky in range(3):
        for kx in range(3):
            tap = ky * 3 + kx
            off = (ky - 1) * width + (kx - 1)
            xs = xh if off == 0 else pltpu.roll(xh, shift=(-off) % r, axis=1)
            xs = xs * m_ref[tap]                      # zero taps outside the image
            acc = acc + jnp.dot(w_ref[tap], xs,
                                preferred_element_type=jnp.float32)
    gates = acc + b_ref[...]                          # bias added once, after taps

    i_g = jax.nn.sigmoid(gates[0 * hidden:1 * hidden])
    f_g = jax.nn.sigmoid(gates[1 * hidden:2 * hidden])
    o_g = jax.nn.sigmoid(gates[2 * hidden:3 * hidden])
    g_g = jnp.tanh(gates[3 * hidden:4 * hidden])

    c_new = f_g * c_ref[...] + i_g * g_g              # f32 cell state
    c_ref[...] = c_new
    h_ref[...] = (o_g * jnp.tanh(c_new)).astype(h_ref.dtype)   # bf16 hidden state


def _fc_loc_pool_kernel(x_ref, w1_ref, b1_ref, p_ref, out_ref):
    """fc_loc 1x1 conv + ReLU + AvgPool (as matmul) over one pixel tile, for
    the whole batch at once.  out (512, B) is a resident accumulator."""
    @pl.when(pl.program_id(0) == 0)
    def _():
        out_ref[...] = jnp.zeros_like(out_ref)
    h1 = jnp.dot(w1_ref[...], x_ref[...], preferred_element_type=jnp.float32)
    h1 = jnp.maximum(h1 + b1_ref[...], 0.0)                       # ReLU, f32
    out_ref[...] += jnp.dot(h1, p_ref[...],
                            preferred_element_type=jnp.float32)   # per-batch mean


# ----------------------------------------------------------------------------
# Pallas wrappers
# ----------------------------------------------------------------------------

def cnn_stem(params, imgs):
    """Synthetic CNN stem: 3x3 stride-4 conv + ReLU -> (Cf, N*Ho*Wo) bf16."""
    patches, ho, wo = im2col_t(imgs, k=3, stride=4, pad=1)        # (27, R)
    kpad = params["stem_w"].shape[1]
    patches = jnp.pad(patches, ((0, kpad - patches.shape[0]), (0, 0)))
    patches = patches.astype(jnp.bfloat16)
    r = patches.shape[1]
    tr = _row_tile(r)
    cf = params["stem_w"].shape[0]
    feat = pl.pallas_call(
        _stem_kernel,
        out_shape=jax.ShapeDtypeStruct((cf, r), jnp.bfloat16),
        grid=(r // tr,),
        in_specs=[pl.BlockSpec((kpad, tr), lambda i: (0, i)),
                  pl.BlockSpec((cf, kpad), lambda i: (0, 0)),
                  pl.BlockSpec((cf, 1), lambda i: (0, 0))],
        out_specs=pl.BlockSpec((cf, tr), lambda i: (0, i)),
        compiler_params=pltpu.CompilerParams(
            dimension_semantics=("parallel",)),
    )(patches, params["stem_w"], params["stem_b"])
    return feat, ho, wo


def convlstm_prefix(params, feats, masks, hidden, width):
    """Run the whole prefix recurrence in one pallas_call; h/c stay in VMEM."""
    t_len, cf, r = feats.shape
    cin = cf + hidden
    kernel = functools.partial(_convlstm_seq_kernel, hidden=hidden, width=width)
    h, c = pl.pallas_call(
        kernel,
        out_shape=(jax.ShapeDtypeStruct((hidden, r), jnp.bfloat16),
                   jax.ShapeDtypeStruct((hidden, r), jnp.float32)),
        grid=(t_len,),
        in_specs=[pl.BlockSpec((1, cf, r), lambda t: (t, 0, 0)),
                  pl.BlockSpec((9, 4 * hidden, cin), lambda t: (0, 0, 0)),
                  pl.BlockSpec((4 * hidden, 1), lambda t: (0, 0)),
                  pl.BlockSpec((9, 1, r), lambda t: (0, 0, 0))],
        out_specs=(pl.BlockSpec((hidden, r), lambda t: (0, 0)),
                   pl.BlockSpec((hidden, r), lambda t: (0, 0))),
        compiler_params=pltpu.CompilerParams(
            dimension_semantics=("arbitrary",),        # time recurrence
            vmem_limit_bytes=32 * 1024 * 1024),        # sized for v7x scoped VMEM
    )(feats, params["lstm_w"], params["lstm_b"], masks)
    return h, c


def fc_loc_apply(params, x, pool_mat):
    """fc_loc head: Pallas (1x1 conv -> ReLU -> AvgPool as matmul) over the whole
    batch, then the tiny 512->6 1x1 conv in plain XLA."""
    cin, r = x.shape
    mid = params["loc_w1"].shape[0]
    batch = pool_mat.shape[1]
    tr = _row_tile(r)
    pooled = pl.pallas_call(
        _fc_loc_pool_kernel,
        out_shape=jax.ShapeDtypeStruct((mid, batch), jnp.float32),
        grid=(r // tr,),
        in_specs=[pl.BlockSpec((cin, tr), lambda j: (0, j)),
                  pl.BlockSpec((mid, cin), lambda j: (0, 0)),
                  pl.BlockSpec((mid, 1), lambda j: (0, 0)),
                  pl.BlockSpec((tr, batch), lambda j: (j, 0))],
        out_specs=pl.BlockSpec((mid, batch), lambda j: (0, 0)),
        compiler_params=pltpu.CompilerParams(
            dimension_semantics=("arbitrary",)),
    )(x, params["loc_w1"], params["loc_b1"], pool_mat)
    return pooled.T @ params["loc_w2"] + params["loc_b2"]          # (B, 6)


# ----------------------------------------------------------------------------
# Plain-JAX glue: stn (affine_grid + grid_sample)
# ----------------------------------------------------------------------------

def affine_grid(theta, h, w):
    """F.affine_grid, align_corners=True (old-PyTorch default). theta: (B,2,3)."""
    xs = jnp.linspace(-1.0, 1.0, w)
    ys = jnp.linspace(-1.0, 1.0, h)
    yy, xx = jnp.meshgrid(ys, xs, indexing="ij")
    base = jnp.stack([xx, yy, jnp.ones_like(xx)], axis=-1)    # (H, W, 3)
    return jnp.einsum("bij,hwj->bhwi", theta, base)           # (B, H, W, 2)


def grid_sample_bilinear(img, grid):
    """F.grid_sample: bilinear, zero padding, align_corners=True."""
    bsz, c, h, w = img.shape
    ix = (grid[..., 0] + 1.0) * 0.5 * (w - 1)
    iy = (grid[..., 1] + 1.0) * 0.5 * (h - 1)
    ix0 = jnp.floor(ix)
    iy0 = jnp.floor(iy)
    ix1 = ix0 + 1.0
    iy1 = iy0 + 1.0
    wx1 = ix - ix0
    wx0 = 1.0 - wx1
    wy1 = iy - iy0
    wy0 = 1.0 - wy1
    flat = img.reshape(bsz, c, h * w)

    def gather(ixq, iyq):
        valid = (ixq >= 0) & (ixq <= w - 1) & (iyq >= 0) & (iyq <= h - 1)
        ixc = jnp.clip(ixq, 0, w - 1).astype(jnp.int32)
        iyc = jnp.clip(iyq, 0, h - 1).astype(jnp.int32)
        idx = (iyc * w + ixc).reshape(bsz, 1, h * w)
        vals = jnp.take_along_axis(
            flat, jnp.broadcast_to(idx, (bsz, c, h * w)), axis=2)
        vals = vals.reshape(bsz, c, h, w)
        return vals * valid[:, None, :, :].astype(img.dtype)

    out = (gather(ix0, iy0) * (wx0 * wy0)[:, None]
           + gather(ix1, iy0) * (wx1 * wy0)[:, None]
           + gather(ix0, iy1) * (wx0 * wy1)[:, None]
           + gather(ix1, iy1) * (wx1 * wy1)[:, None])
    return out


def stn(img, theta):
    theta = theta.reshape(-1, 2, 3)
    grid = affine_grid(theta, img.shape[2], img.shape[3])
    return grid_sample_bilinear(img, grid)


# ----------------------------------------------------------------------------
# Full ConvLSTM.forward
# ----------------------------------------------------------------------------

def convlstm_forward(params, prefix, unstable, hidden):
    seq = list(prefix) + list(unstable)
    num_prefix = len(prefix)
    bsz = seq[0].shape[0]

    # CNN stem over the whole sequence in one gridded call (frames folded into batch).
    imgs = jnp.concatenate(seq, axis=0)                       # (T*B, 3, H, W)
    feats_all, hf, wf = cnn_stem(params, imgs)                # (Cf, T*B*hf*wf) bf16
    r = bsz * hf * wf
    feats = [feats_all[:, t * r:(t + 1) * r] for t in range(len(seq))]

    # ConvLSTM recurrence over the prefix: one pallas_call, h/c resident in VMEM.
    masks = make_conv_masks(bsz, hf, wf)                      # (9, 1, R)
    prefix_feats = jnp.stack(feats[:num_prefix], axis=0)      # (T, Cf, R)
    h, _c = convlstm_prefix(params, prefix_feats, masks, hidden, wf)

    # Spatial-transformer head on the unstable frames.
    pool_mat = (jnp.repeat(jnp.eye(bsz, dtype=jnp.float32), hf * wf, axis=0)
                / float(hf * wf))                             # (R, B) avg-pool matmul
    warpped, mask, thetas = [], [], []
    for idx in range(len(unstable)):
        x = jnp.concatenate([feats[num_prefix + idx], h], axis=0)   # (Cf+Ch, R) bf16
        theta = fc_loc_apply(params, x, pool_mat)                   # (B, 6) f32
        thetas.append(theta.reshape(bsz, 6, 1, 1))
        img = unstable[idx]
        warpped.append(stn(img, theta))
        ones = jnp.ones((img.shape[0], 1, img.shape[2], img.shape[3]), img.dtype)
        mask.append(stn(ones, theta))
    return warpped, mask, thetas


# ----------------------------------------------------------------------------
# Deterministic parameter init (shapes from __init__; no checkpoint load)
# ----------------------------------------------------------------------------

def init_params(key, cnn_in=3, cnn_feat=32, hidden=32, loc_mid=512):
    k1, k2, k3 = jax.random.split(key, 3)

    # Synthetic CNN stem: Conv2d(cnn_in, cnn_feat, 3, stride=4, pad=1) + ReLU.
    stem_w = 0.1 * jax.random.normal(k1, (cnn_feat, cnn_in, 3, 3), jnp.float32)
    stem_b = jnp.zeros((cnn_feat,), jnp.float32)
    k_raw = cnn_in * 9
    k_pad = ((k_raw + 31) // 32) * 32                         # pad K: 27 -> 32
    stem_w_mat = jnp.pad(stem_w.reshape(cnn_feat, k_raw),
                         ((0, 0), (0, k_pad - k_raw))).astype(jnp.bfloat16)

    # ConvLSTMCell(cnn_feat, hidden): 3x3 conv (cnn_feat+hidden) -> 4*hidden.
    # Stored per-tap: (9, 4*hidden, cnn_feat+hidden), gate order i, f, o, g.
    lstm_w = 0.1 * jax.random.normal(
        k2, (4 * hidden, cnn_feat + hidden, 3, 3), jnp.float32)
    lstm_b = jnp.zeros((4 * hidden,), jnp.float32)
    lstm_w_taps = lstm_w.transpose(2, 3, 0, 1).reshape(
        9, 4 * hidden, cnn_feat + hidden).astype(jnp.bfloat16)

    # fc_loc: Conv2d(cnn_feat+hidden, 512, 1) -> ReLU -> AvgPool -> Conv2d(512, 6, 1)
    loc_w1 = 0.1 * jax.random.normal(
        k3, (loc_mid, cnn_feat + hidden, 1, 1), jnp.float32)
    loc_b1 = jnp.zeros((loc_mid,), jnp.float32)
    loc_w2 = jnp.zeros((6, loc_mid, 1, 1), jnp.float32)           # weight.fill_(0)
    loc_b2 = jnp.array([1., 0., 0., 0., 1., 0.], jnp.float32)     # identity theta

    return dict(
        stem_w=stem_w_mat, stem_b=stem_b.reshape(cnn_feat, 1),
        lstm_w=lstm_w_taps, lstm_b=lstm_b.reshape(4 * hidden, 1),
        loc_w1=loc_w1.reshape(loc_mid, -1).astype(jnp.bfloat16),
        loc_b1=loc_b1.reshape(loc_mid, 1),
        loc_w2=loc_w2.reshape(6, loc_mid).T,                      # (512, 6)
        loc_b2=loc_b2.reshape(1, 6),
    )


# ----------------------------------------------------------------------------
# Main
# ----------------------------------------------------------------------------

if __name__ == "__main__":
    key = jax.random.PRNGKey(0)
    pkey, dkey = jax.random.split(key)

    B, H, W = 2, 32, 32     # stem stride 4 -> 8x8 feature map, B*8*8 = 128 pixel lanes
    CNN_FEAT = 32
    HIDDEN = 32             # opt.rnn_chn; 4*hidden = 128 gate rows
    NUM_PREFIX = 3
    NUM_UNSTABLE = 2

    params = init_params(pkey, cnn_in=3, cnn_feat=CNN_FEAT,
                         hidden=HIDDEN, loc_mid=512)

    dkeys = jax.random.split(dkey, NUM_PREFIX + NUM_UNSTABLE)
    prefix = [jax.random.normal(dkeys[i], (B, 3, H, W), jnp.float32)
              for i in range(NUM_PREFIX)]
    unstable = [jax.random.normal(dkeys[NUM_PREFIX + i], (B, 3, H, W), jnp.float32)
                for i in range(NUM_UNSTABLE)]

    warpped, mask, thetas = convlstm_forward(params, prefix, unstable, HIDDEN)
    jax.block_until_ready((warpped, mask, thetas))

    assert len(warpped) == NUM_UNSTABLE and len(mask) == NUM_UNSTABLE
    assert warpped[0].shape == (B, 3, H, W)
    assert mask[0].shape == (B, 1, H, W)
    assert thetas[0].shape == (B, 6, 1, 1)
    print("KERNEL_OK")
</pallas_src>

<mosaic_0001>
module attributes {stable_mosaic.version = 11 : i64} {
  func.func @_stem_kernel(%arg0: i32, %arg1: memref<32x128xbf16, #tpu.memory_space<vmem>>, %arg2: memref<32x32xbf16, #tpu.memory_space<vmem>>, %arg3: memref<32x1xf32, #tpu.memory_space<vmem>>, %arg4: memref<32x128xbf16, #tpu.memory_space<vmem>>) attributes {dimension_semantics = [#tpu.dimension_semantics<parallel>], iteration_bounds = array<i64: 5>, scalar_prefetch = 0 : i64, scratch_operands = 0 : i64, tpu.core_type = #tpu.core_type<tc>, window_params = [{transform_indices = @transform_0, window_bounds = array<i64: 32, 128>}, {pipeline_mode = #tpu.pipeline_mode<synchronous>, transform_indices = @transform_1, window_bounds = array<i64: 32, 32>}, {pipeline_mode = #tpu.pipeline_mode<synchronous>, transform_indices = @transform_2, window_bounds = array<i64: 32, 1>}, {transform_indices = @transform_3, window_bounds = array<i64: 32, 128>}]} {
    %c0 = arith.constant 0 : index
    %c0_0 = arith.constant 0 : index
    %0 = vector.load %arg2[%c0, %c0_0] : memref<32x32xbf16, #tpu.memory_space<vmem>>, vector<32x32xbf16>
    %c0_1 = arith.constant 0 : index
    %c0_2 = arith.constant 0 : index
    %1 = vector.load %arg1[%c0_1, %c0_2] : memref<32x128xbf16, #tpu.memory_space<vmem>>, vector<32x128xbf16>
    %cst = arith.constant dense<0.000000e+00> : vector<32x128xf32>
    %2 = tpu.matmul %0, %1, %cst {dimension_numbers = #tpu.dot_dimension_numbers<[1], [0], [0], [1], [0, 0, 1, 1], [], []>} : vector<32x32xbf16>, vector<32x128xbf16>, vector<32x128xf32> -> vector<32x128xf32>
    %c0_3 = arith.constant 0 : index
    %c0_4 = arith.constant 0 : index
    %3 = vector.load %arg3[%c0_3, %c0_4] : memref<32x1xf32, #tpu.memory_space<vmem>>, vector<32x1xf32>
    %4 = vector.broadcast %3 : vector<32x1xf32> to vector<32x128xf32>
    %5 = arith.addf %2, %4 : vector<32x128xf32>
    %cst_5 = arith.constant 0.000000e+00 : f32
    %6 = vector.broadcast %cst_5 : f32 to vector<32x128xf32>
    %7 = arith.maximumf %5, %6 : vector<32x128xf32>
    %8 = arith.truncf %7 : vector<32x128xf32> to vector<32x128xbf16>
    %c0_6 = arith.constant 0 : index
    %c0_7 = arith.constant 0 : index
    %9 = vector.load %arg4[%c0_6, %c0_7] : memref<32x128xbf16, #tpu.memory_space<vmem>>, vector<32x128xbf16>
    tpu.vector_store %arg4[%c0_6, %c0_7], %8 {strides = array<i32>} : memref<32x128xbf16, #tpu.memory_space<vmem>>, vector<32x128xbf16>,
    return
  }
  func.func @transform_0(%arg0: i32) -> (i32, i32) {
    %c0_i32 = arith.constant 0 : i32
    %c0_i32_0 = arith.constant 0 : i32
    return %c0_i32, %arg0 : i32, i32
  }
  func.func @transform_1(%arg0: i32) -> (i32, i32) {
    %c0_i32 = arith.constant 0 : i32
    %c0_i32_0 = arith.constant 0 : i32
    %c0_i32_1 = arith.constant 0 : i32
    return %c0_i32, %c0_i32_0 : i32, i32
  }
  func.func @transform_2(%arg0: i32) -> (i32, i32) {
    %c0_i32 = arith.constant 0 : i32
    %c0_i32_0 = arith.constant 0 : i32
    %c0_i32_1 = arith.constant 0 : i32
    return %c0_i32, %c0_i32_0 : i32, i32
  }
  func.func @transform_3(%arg0: i32) -> (i32, i32) {
    %c0_i32 = arith.constant 0 : i32
    %c0_i32_0 = arith.constant 0 : i32
    return %c0_i32, %arg0 : i32, i32
  }
}

</mosaic_0001>

<llo_original>
// kernel: tpu_custom_call.1
$region0: #{tpu_custom_call.1}
  #allocation0 [shape = 'u32[]', space=smem, size = 0x4, offset = 0x4, fixed_abs, tag = 'smem constant byte address 0x4 - core index']
  #allocation1 [shape = 'u32[72,128]{1,0:T(1,128)}', space=vmem, size = 0x9000, scoped, tag = 'internal scratch']
  %s0 = inlined_call_operand.hbm [shape: bf16[32,640], index: 0, kind: input, shape index: {}]
  %s1 = inlined_call_operand.vmem [shape: bf16[32,32], index: 1, kind: input, shape index: {}]
  %s2 = inlined_call_operand.vmem [shape: f32[32,1], index: 2, kind: input, shape index: {}]
  %s3 = inlined_call_operand.hbm [shape: bf16[32,640], index: 3, kind: output, shape index: {}]
  %s4 = sld [smem:[#allocation0]]
  $region49: #{tpu_custom_call.1} parent=0
    _
  %s6 = ssub.s32 1, %s4
  %s7 = scalar_select 0, %s6, %s4
  $region1: #{tpu_custom_call.1} parent=0
    #allocation2 [shape = 'u8[16384]{0}', space=vmem, size = 0x4000, scoped, tag = 'input window, operand 0']
    #allocation3 [shape = 's32[2]{0}', space=sflag, size = 0x8, scoped, tag = 'scoped memory for tpu_custom_call.1']
    #allocation4 [shape = 's32[2]{0}', space=sflag, size = 0x8, scoped, tag = 'scoped memory for tpu_custom_call.1']
    #allocation5 [shape = 'u8[16384]{0}', space=vmem, size = 0x4000, scoped, tag = 'output window, operand 0']
    %8 = vsyncpa [#allocation3], 0
    %s9 = scalar_lea.sflag [#allocation3], 1
    %10 = vsyncpa %s9, 0
    %11 = vsyncpa [#allocation4], 0
    %s12 = scalar_lea.sflag [#allocation4], 1
    %13 = vsyncpa %s12, 0
    loop: start=0, step=1, limit=7
    $region2: #{tpu_custom_call.1} parent=1 // loop_pre_header
      _
    $region3: #{tpu_custom_call.1} parent=1 // loop_header
      %s15 = sphi 0, %s19
      %p16 = scmp.ge.s32.totalorder %s15, 7
      %s25 = sphi 0, %s27
      %s28 = sphi 0, %s25
      %s29 = sphi 0, %s28
      %s45 = sphi 0, %s29
      %s49 = sphi 0, %s49
      %s51 = sphi 0, %s49
      %s52 = sphi 0, %s51
      %s66 = sphi 0, %s52
      %s70 = sphi 0, %s70
      %s72 = sphi 0, %s70
      %s73 = sphi 0, %s72
      %s87 = sphi 0, %s73
      %s93 = sphi 0, %s95
      %s96 = sphi 0, %s93
      %s97 = sphi 0, %s96
      %s113 = sphi 0, %s97
    $region4: #{tpu_custom_call.1} parent=1 // loop_header_branch
      %18 = sbr.rel (%p16) target = $region8
    $region5: #{tpu_custom_call.1} parent=1 // loop_body
      %s20 = ssub.s32 %s15, 1
      %s21 = ssub.s32 %s15, 2
      %s22 = sadd.s32 %s15, 1
      %s23 = ssub.s32 %s15, %s22
      %p24 = scmp.eq.s32.totalorder %s23, 0
      %s26 = sadd.s32 %s25, 1
      %s27 = scalar_select %p24, %s25, %s26
      %p30 = pneg %p24
      %p31 = scmp.eq.s32.totalorder %s15, 4
      %p32 = por %p30, %p31
      %p33 = scmp.ne.s32.totalorder %s25, %s28
      %p34 = scmp.eq.s32.totalorder %s15, 0
      %p35 = por %p33, %p34
      %p36 = scmp.ne.s32.totalorder %s25, %s28
      %p37 = scmp.eq.s32.totalorder %s20, 4
      %p38 = por %p36, %p37
      %p39 = scmp.ne.s32.totalorder %s28, %s29
      %p40 = scmp.eq.s32.totalorder %s20, 0
      %p41 = por %p39, %p40
      %p42 = scmp.ne.s32.totalorder %s28, %s29
      %p43 = scmp.eq.s32.totalorder %s21, 4
      %p44 = por %p42, %p43
      %p46 = scmp.ne.s32.totalorder %s29, %s45
      %p47 = scmp.eq.s32.totalorder %s21, 0
      %p48 = por %p46, %p47
      %s50 = sadd.s32 %s49, 1
      %p53 = scmp.eq.s32.totalorder %s15, 4
      %p54 = scmp.ne.s32.totalorder %s49, %s51
      %p55 = scmp.eq.s32.totalorder %s15, 0
      %p56 = por %p54, %p55
      %p57 = scmp.ne.s32.totalorder %s49, %s51
      %p58 = scmp.eq.s32.totalorder %s20, 4
      %p59 = por %p57, %p58
      %p60 = scmp.ne.s32.totalorder %s51, %s52
      %p61 = scmp.eq.s32.totalorder %s20, 0
      %p62 = por %p60, %p61
      %p63 = scmp.ne.s32.totalorder %s51, %s52
      %p64 = scmp.eq.s32.totalorder %s21, 4
      %p65 = por %p63, %p64
      %p67 = scmp.ne.s32.totalorder %s52, %s66
      %p68 = scmp.eq.s32.totalorder %s21, 0
      %p69 = por %p67, %p68
      %s71 = sadd.s32 %s70, 1
      %p74 = scmp.eq.s32.totalorder %s15, 4
      %p75 = scmp.ne.s32.totalorder %s70, %s72
      %p76 = scmp.eq.s32.totalorder %s15, 0
      %p77 = por %p75, %p76
      %p78 = scmp.ne.s32.totalorder %s70, %s72
      %p79 = scmp.eq.s32.totalorder %s20, 4
      %p80 = por %p78, %p79
      %p81 = scmp.ne.s32.totalorder %s72, %s73
      %p82 = scmp.eq.s32.totalorder %s20, 0
      %p83 = por %p81, %p82
      %p84 = scmp.ne.s32.totalorder %s72, %s73
      %p85 = scmp.eq.s32.totalorder %s21, 4
      %p86 = por %p84, %p85
      %p88 = scmp.ne.s32.totalorder %s73, %s87
      %p89 = scmp.eq.s32.totalorder %s21, 0
      %p90 = por %p88, %p89
      %s91 = ssub.s32 %s15, %s22
      %p92 = scmp.eq.s32.totalorder %s91, 0
      %s94 = sadd.s32 %s93, 1
      %s95 = scalar_select %p92, %s93, %s94
      %p98 = pneg %p92
      %p99 = scmp.eq.s32.totalorder %s15, 4
      %p100 = por %p98, %p99
      %p101 = scmp.ne.s32.totalorder %s93, %s96
      %p102 = scmp.eq.s32.totalorder %s15, 0
      %p103 = por %p101, %p102
      %p104 = scmp.ne.s32.totalorder %s93, %s96
      %p105 = scmp.eq.s32.totalorder %s20, 4
      %p106 = por %p104, %p105
      %p107 = scmp.ne.s32.totalorder %s96, %s97
      %p108 = scmp.eq.s32.totalorder %s20, 0
      %p109 = por %p107, %p108
      %p110 = scmp.ne.s32.totalorder %s96, %s97
      %p111 = scmp.eq.s32.totalorder %s21, 4
      %p112 = por %p110, %p111
      %p114 = scmp.ne.s32.totalorder %s97, %s113
      %p115 = scmp.eq.s32.totalorder %s21, 0
      %p116 = por %p114, %p115
      %p117 = scmp.le.s32.totalorder 1, %s15
      %p118 = scmp.lt.s32.totalorder %s15, 6
      %p119 = pnand %p117, %p118
      %p120 = pneg %p119
      // Predicated region
      $region9: #{tpu_custom_call.1} parent=5 // pred_check
        _
      $region10: #{tpu_custom_call.1} parent=5 // pred_check_branch
        %122 = sbr.rel (%p119) target = $region12
      $region11: #{tpu_custom_call.1} parent=5 // pred_region
        %s123 = ssub.s32 %s15, 1
        // Predicated region
        $region13: #{tpu_custom_call.1} parent=11 // pred_check
          %p124 = pneg %p62
        $region14: #{tpu_custom_call.1} parent=11 // pred_check_branch
          %126 = sbr.rel (%p124) target = $region16
        $region15: #{tpu_custom_call.1} parent=11 // pred_region
          _
        $region16: #{tpu_custom_call.1} parent=11 // pred_fallthru
          _
        // Predicated region
        $region17: #{tpu_custom_call.1} parent=11 // pred_check
          %p127 = pneg %p83
        $region18: #{tpu_custom_call.1} parent=11 // pred_check_branch
          %129 = sbr.rel (%p127) target = $region20
        $region19: #{tpu_custom_call.1} parent=11 // pred_region
          _
        $region20: #{tpu_custom_call.1} parent=11 // pred_fallthru
          _
      $region12: #{tpu_custom_call.1} parent=5 // pred_fallthru
        _
      %p130 = scmp.lt.s32.totalorder %s15, 5
      // Predicated region
      $region21: #{tpu_custom_call.1} parent=5 // pred_check
        %p131 = pneg %p130
      $region22: #{tpu_custom_call.1} parent=5 // pred_check_branch
        %133 = sbr.rel (%p131) target = $region24
      $region23: #{tpu_custom_call.1} parent=5 // pred_region
        // Predicated region
        $region25: #{tpu_custom_call.1} parent=23 // pred_check
          %p134 = pneg %p35
        $region26: #{tpu_custom_call.1} parent=23 // pred_check_branch
          %136 = sbr.rel (%p134) target = $region28
        $region27: #{tpu_custom_call.1} parent=23 // pred_region
          %s137 = sand.u32 %s25, 1
          %s138 = scalar_lea.sflag [#allocation3], %s137
          %s139 = sand.u32 %s25, 1
          %s140 = smul.addr %s139, 16
          %s141 = scalar_lea.vmem [#allocation2], %s140
          %143 = vsyncadd %s138, 0
          %s144 = smul.addr %s15, 4
          %s145 = scalar_lea.hbm %s0, %s144
          %s146 = sshll.u32 %s145, 4
          %s147 = int_to_ptr.hbm [resolvable:$true] %s146
          %s148 = sshll.u32 %s141, 4
          %s149 = int_to_ptr.vmem [resolvable:$true] %s148
          %154 = dma.hbm_to_vmem [thread:$0]  %s147, 256, %s149, %s138, 320, 64, 4
        $region28: #{tpu_custom_call.1} parent=23 // pred_fallthru
          _
      $region24: #{tpu_custom_call.1} parent=5 // pred_fallthru
        _
      %p155 = scmp.le.s32.totalorder 1, %s15
      %p156 = scmp.lt.s32.totalorder %s15, 6
      %p157 = pnand %p155, %p156
      %p158 = pneg %p157
      // Predicated region
      $region29: #{tpu_custom_call.1} parent=5 // pred_check
        _
      $region30: #{tpu_custom_call.1} parent=5 // pred_check_branch
        %160 = sbr.rel (%p157) target = $region32
      $region31: #{tpu_custom_call.1} parent=5 // pred_region
        %s161 = ssub.s32 %s15, 1
        %s162 = sand.u32 %s28, 1
        %s163 = scalar_lea.sflag [#allocation3], %s162
        %s164 = sand.u32 %s28, 1
        %s165 = smul.addr %s164, 16
        %s166 = scalar_lea.vmem [#allocation2], %s165
        // Predicated region
        $region33: #{tpu_custom_call.1} parent=31 // pred_check
          %p167 = pneg %p41
        $region34: #{tpu_custom_call.1} parent=31 // pred_check_branch
          %169 = sbr.rel (%p167) target = $region36
        $region35: #{tpu_custom_call.1} parent=31 // pred_region
          %171 = dma.done %s163, 256
        $region36: #{tpu_custom_call.1} parent=31 // pred_fallthru
          _
        %s172 = sand.u32 %s28, 1
        %s173 = scalar_lea.sflag [#allocation3], %s172
        %s174 = sand.u32 %s28, 1
        %s175 = smul.addr %s174, 16
        %s176 = scalar_lea.vmem [#allocation2], %s175
        %p177 = pneg %p41
        %p178 = pneg %p38
        %p179 = pneg %p62
        %p180 = pneg %p59
        %p181 = pneg %p83
        %p182 = pneg %p80
        %p183 = pneg %p109
        %p184 = pneg %p106
        %s185 = sand.u32 %s96, 1
        %s186 = scalar_lea.sflag [#allocation4], %s185
        %s187 = sand.u32 %s96, 1
        %s188 = smul.addr %s187, 16
        %s189 = scalar_lea.vmem [#allocation5], %s188
        %v191 = vld [vmem:[%s1] sm:$0xf]
        %v192 = vld [vmem:[%s1 + $0x4] sm:$0xf]
        %v193 = vld [vmem:[%s1 + $0x8] sm:$0xf]
        %v194 = vld [vmem:[%s1 + $0xc] sm:$0xf]
        %v195 = vld [vmem:[%s166] sm:$0xf]
        %v196 = vld [vmem:[%s166 + $0x4] sm:$0xf]
        %v197 = vld [vmem:[%s166 + $0x8] sm:$0xf]
        %v198 = vld [vmem:[%s166 + $0xc] sm:$0xf]
        %v199 = vld [vmem:[%s2] sm:$0xff]
        %v200 = vld [vmem:[%s2 + $0x8] sm:$0xff]
        %v201 = vld [vmem:[%s2 + $0x10] sm:$0xff]
        %v202 = vld [vmem:[%s2 + $0x18] sm:$0xff]
        %204 = vset.pattern.permute.xlu0 0
        %205 = vperm.xlu0 %204, %v199
        %v206 = vpop.permute.xlu0 %205
        %209 = vset.pattern.permute.xlu0 0
        %210 = vperm.xlu0 %209, %v200
        %v211 = vpop.permute.xlu0 %210
        %214 = vset.pattern.permute.xlu0 0
        %215 = vperm.xlu0 %214, %v201
        %v216 = vpop.permute.xlu0 %215
        %219 = vset.pattern.permute.xlu0 0
        %220 = vperm.xlu0 %219, %v202
        %v221 = vpop.permute.xlu0 %220
        %v227 = vunpack.c.l.b16 %v191
        %v228 = vunpack.c.l.b16 %v192
        %v229 = vunpack.c.l.b16 %v193
        %v230 = vunpack.c.l.b16 %v194
        %v231 = vpack.c.b16 %v228, %v227
        %v232 = vpack.c.b16 %v230, %v229
        %v237 = vunpack.c.l.b16 %v195
        %v238 = vunpack.c.l.b16 %v196
        %v239 = vunpack.c.l.b16 %v197
        %v240 = vunpack.c.l.b16 %v198
        %v241 = vpack.c.b16 %v238, %v237
        %v242 = vpack.c.b16 %v240, %v239
        %vm245 = vcmask 261120
        %v247 = vsel %vm245, %v231, 0
        %v250 = vsel %vm245, %v232, 0
        %252 = vmatpush.bf16.msra.mxu0 0
        %253 = vmatpush.bf16.msra.mxu0 0
        %254 = vmatpush.bf16.msra.mxu0 0
        %255 = vmatpush.bf16.msra.mxu0 0
        %256 = vmatpush.bf16.msra.mxu0 0
        %257 = vmatpush.bf16.msra.mxu0 0
        %258 = vmatpush.bf16.msra.mxu0 %v242
        %259 = vmatpush.bf16.msra.mxu0 %v241
        %260 = vmatmul.bf16.gmra.mxu0 %v247
        %v261 = vpop.f32.mrf.mxu0
        %v262 = vadd.f32 %v206, %v261
        %v263 = vpop.f32.mrf.mxu0
        %v264 = vadd.f32 %v211, %v263
        %265 = vmatmul.bf16.gmra.mxu0 %v250
        %v266 = vpop.f32.mrf.mxu0
        %v267 = vadd.f32 %v216, %v266
        %v268 = vpop.f32.mrf.mxu0
        %v269 = vadd.f32 %v221, %v268
        %270 = vdwg.mxu0
        %v271 = vmax.f32 %v262, 0.0
        %v272 = vmax.f32 %v264, 0.0
        %v273 = vmax.f32 %v267, 0.0
        %v274 = vmax.f32 %v269, 0.0
        %v275 = vpack.c.bf16 %v271, %v271
        %v276 = vpack.c.bf16 %v272, %v272
        %v277 = vpack.c.bf16 %v273, %v273
        %v278 = vpack.c.bf16 %v274, %v274
        %279 = vst [vmem:[%s189] sm:$0xf] %v275
        %280 = vst [vmem:[%s189 + $0x4] sm:$0xf] %v276
        %281 = vst [vmem:[%s189 + $0x8] sm:$0xf] %v277
        %282 = vst [vmem:[%s189 + $0xc] sm:$0xf] %v278
        %s283 = sand.u32 %s96, 1
        %s284 = scalar_lea.sflag [#allocation4], %s283
        %s285 = sand.u32 %s96, 1
        %s286 = smul.addr %s285, 16
        %s287 = scalar_lea.vmem [#allocation5], %s286
        // Predicated region
        $region37: #{tpu_custom_call.1} parent=31 // pred_check
          %p288 = pneg %p106
        $region38: #{tpu_custom_call.1} parent=31 // pred_check_branch
          %290 = sbr.rel (%p288) target = $region40
        $region39: #{tpu_custom_call.1} parent=31 // pred_region
          %292 = vsyncadd %s284, 0
          %s293 = smul.addr %s20, 4
          %s294 = scalar_lea.hbm %s3, %s293
          %s295 = sshll.u32 %s287, 4
          %s296 = int_to_ptr.vmem [resolvable:$true] %s295
          %s297 = sshll.u32 %s294, 4
          %s298 = int_to_ptr.hbm [resolvable:$true] %s297
          %303 = dma.vmem_to_hbm [thread:$0]  %s296, 256, %s298, %s284, 64, 320, 4
        $region40: #{tpu_custom_call.1} parent=31 // pred_fallthru
          _
      $region32: #{tpu_custom_call.1} parent=5 // pred_fallthru
        _
      %p304 = scmp.le.s32.totalorder 2, %s15
      // Predicated region
      $region41: #{tpu_custom_call.1} parent=5 // pred_check
        %p305 = pneg %p304
      $region42: #{tpu_custom_call.1} parent=5 // pred_check_branch
        %307 = sbr.rel (%p305) target = $region44
      $region43: #{tpu_custom_call.1} parent=5 // pred_region
        %s308 = ssub.s32 %s15, 2
        // Predicated region
        $region45: #{tpu_custom_call.1} parent=43 // pred_check
          %p309 = pneg %p112
        $region46: #{tpu_custom_call.1} parent=43 // pred_check_branch
          %311 = sbr.rel (%p309) target = $region48
        $region47: #{tpu_custom_call.1} parent=43 // pred_region
          %s312 = sand.u32 %s97, 1
          %s313 = scalar_lea.sflag [#allocation4], %s312
          %s314 = sand.u32 %s97, 1
          %s315 = smul.addr %s314, 16
          %s316 = scalar_lea.vmem [#allocation5], %s315
          %318 = dma.done %s313, 256
        $region48: #{tpu_custom_call.1} parent=43 // pred_fallthru
          _
      $region44: #{tpu_custom_call.1} parent=5 // pred_fallthru
        _
    $region6: #{tpu_custom_call.1} parent=1 // loop_footer
      %s19 = sadd.s32 1, %s15
    $region7: #{tpu_custom_call.1} parent=1 // loop_footer_branch
      %14 = sbr.rel target = $region3
    $region8: #{tpu_custom_call.1} parent=1 // loop_exit
      _
    %319 = vsyncpa [#allocation3], 1
    %s320 = scalar_lea.sflag [#allocation3], 1
    %321 = vsyncpa %s320, 1
    %322 = vsyncpa [#allocation4], 1
    %s323 = scalar_lea.sflag [#allocation4], 1
    %324 = vsyncpa %s323, 1

</llo_original>
